<compile_context>
chip_gen: v7x
topology: tpu7x:2x2x1
jax: 0.10.0
libtpu: 0.0.40
codegen_flags: <defaults>
</compile_context>

<pallas_src>
import jax
import jax.numpy as jnp
from jax.experimental import pallas as pl
from jax.experimental.pallas import tpu as pltpu


# Per-buffer byte threshold below which the gridless full-array-VMEM path is
# used.  4 MiB (x2 buffers) is comfortably inside the scoped-VMEM default on
# every generation (v5e 16 MiB, v6e 32 MiB, v7x 32 MiB).
_GRIDLESS_MAX_BYTES = 4 << 20
_LANE = 128


def _feature_mask_kernel(mask_ref, out_ref):
    # sigmoid(ones_like(x) * x) == sigmoid(x); the multiply-by-one is elided.
    # EUP-friendly sigmoid: one tanh on the (otherwise idle) EUP slot; the VPU
    # only sees a mul and an add.
    x = mask_ref[...]
    out_ref[...] = 0.5 * jnp.tanh(0.5 * x) + 0.5


def feature_mask_forward(mask: jax.Array) -> jax.Array:
    """mask: (D,) float32 -> sigmoid(ones_like(mask) * mask): (D,) float32."""
    d = mask.shape[0]
    nbytes = d * mask.dtype.itemsize
    cost = pl.CostEstimate(flops=2 * d, transcendentals=d, bytes_accessed=2 * nbytes)

    if nbytes <= _GRIDLESS_MAX_BYTES or d % _LANE != 0:
        # Small-D path (the real FeatureMask regime, e.g. D=32): gridless,
        # full-array VMEM specs — no grid prologue/epilogue, no double buffer
        # for a sub-vreg tile.
        # TODO(synk): a large D that is not a multiple of 128 would need a
        #             padded tiled path; not needed for this module.
        mask2d = mask.reshape(1, d)  # lane axis last; contiguous reshape = bitcast
        out2d = pl.pallas_call(
            _feature_mask_kernel,
            out_shape=jax.ShapeDtypeStruct((1, d), mask.dtype),
            in_specs=[pl.BlockSpec(memory_space=pltpu.MemorySpace.VMEM)],
            out_specs=pl.BlockSpec(memory_space=pltpu.MemorySpace.VMEM),
            cost_estimate=cost,
        )(mask2d)
        return out2d.reshape(d)

    # Large-D path: lane-dense tiled grid.  Reshape the flat parameter into a
    # (rows, lanes) slab (contiguous reshape = bitcast), tile rows, and mark
    # the axis parallel so both v7x TensorCores take half the rows.
    lanes = 1024 if d % 1024 == 0 else _LANE
    rows = d // lanes
    tile_rows = rows if rows < 512 else 512   # full dim, or a multiple of 8
    grid = (pl.cdiv(rows, tile_rows),)

    mask2d = mask.reshape(rows, lanes)
    out2d = pl.pallas_call(
        _feature_mask_kernel,
        out_shape=jax.ShapeDtypeStruct((rows, lanes), mask.dtype),
        grid=grid,
        in_specs=[pl.BlockSpec((tile_rows, lanes), lambda i: (i, 0))],
        out_specs=pl.BlockSpec((tile_rows, lanes), lambda i: (i, 0)),
        compiler_params=pltpu.CompilerParams(dimension_semantics=("parallel",)),
        cost_estimate=cost,
    )(mask2d)
    return out2d.reshape(d)


if __name__ == "__main__":
    projection_dim = 32

    # Parameter initialized exactly as the module does: zeros(projection_dim).
    mask_param = jnp.zeros((projection_dim,), dtype=jnp.float32)

    out = jax.block_until_ready(feature_mask_forward(mask_param))
    ref = jax.nn.sigmoid(jnp.ones_like(mask_param) * mask_param)
    assert out.shape == (projection_dim,) and out.dtype == jnp.float32
    assert jnp.allclose(out, ref, atol=1e-5), (out, ref)

    # Sanity check with a deterministic non-trivial mask value.
    key = jax.random.PRNGKey(0)
    mask_rand = jax.random.normal(key, (projection_dim,), dtype=jnp.float32)
    out_rand = jax.block_until_ready(feature_mask_forward(mask_rand))
    ref_rand = jax.nn.sigmoid(jnp.ones_like(mask_rand) * mask_rand)
    assert jnp.allclose(out_rand, ref_rand, atol=1e-5), (out_rand, ref_rand)

    print("KERNEL_OK")
</pallas_src>

<mosaic_0001>
module attributes {stable_mosaic.version = 11 : i64} {
  func.func @_feature_mask_kernel(%arg0: memref<1x32xf32, #tpu.memory_space<vmem>>, %arg1: memref<1x32xf32, #tpu.memory_space<vmem>>) attributes {dimension_semantics = [], scalar_prefetch = 0 : i64, scratch_operands = 0 : i64, tpu.core_type = #tpu.core_type<tc>} {
    %c0 = arith.constant 0 : index
    %c0_0 = arith.constant 0 : index
    %0 = vector.load %arg0[%c0, %c0_0] : memref<1x32xf32, #tpu.memory_space<vmem>>, vector<1x32xf32>
    %cst = arith.constant 5.000000e-01 : f32
    %1 = vector.broadcast %cst : f32 to vector<1x32xf32>
    %2 = arith.mulf %1, %0 : vector<1x32xf32>
    %3 = math.tanh %2 : vector<1x32xf32>
    %cst_1 = arith.constant 5.000000e-01 : f32
    %4 = vector.broadcast %cst_1 : f32 to vector<1x32xf32>
    %5 = arith.mulf %4, %3 : vector<1x32xf32>
    %cst_2 = arith.constant 5.000000e-01 : f32
    %6 = vector.broadcast %cst_2 : f32 to vector<1x32xf32>
    %7 = arith.addf %5, %6 : vector<1x32xf32>
    %c0_3 = arith.constant 0 : index
    %c0_4 = arith.constant 0 : index
    %8 = vector.load %arg1[%c0_3, %c0_4] : memref<1x32xf32, #tpu.memory_space<vmem>>, vector<1x32xf32>
    tpu.vector_store %arg1[%c0_3, %c0_4], %7 {strides = array<i32>} : memref<1x32xf32, #tpu.memory_space<vmem>>, vector<1x32xf32>,
    return
  }
}

</mosaic_0001>

<llo_original>
// kernel: tpu_custom_call.1
$region0: #{tpu_custom_call.1}
  #allocation0 [shape = 'u32[]', space=smem, size = 0x4, offset = 0x4, fixed_abs, tag = 'smem constant byte address 0x4 - core index']
  #allocation1 [shape = 'u32[144,128]{1,0:T(1,128)}', space=vmem, size = 0x12000, scoped, tag = 'internal scratch']
  %s0 = inlined_call_operand.hbm [shape: f32[1,32], index: 0, kind: input, shape index: {}]
  %s1 = inlined_call_operand.hbm [shape: f32[1,32], index: 1, kind: output, shape index: {}]
  %s2 = sld [smem:[#allocation0]]
  $region18: #{tpu_custom_call.1} parent=0
    _
  %s4 = ssub.s32 1, %s2
  %s5 = scalar_select 0, %s4, %s2
  $region1: #{tpu_custom_call.1} parent=0
    #allocation2 [shape = 'u8[512]{0}', space=vmem, size = 0x400, scoped, tag = 'input window, operand 0, single buffered']
    #allocation3 [shape = 's32[1]{0}', space=sflag, size = 0x4, scoped, tag = 'scoped memory for tpu_custom_call.1']
    #allocation4 [shape = 's32[1]{0}', space=sflag, size = 0x4, scoped, tag = 'scoped memory for tpu_custom_call.1']
    #allocation5 [shape = 'u8[512]{0}', space=vmem, size = 0x400, scoped, tag = 'output window, operand 0, single buffered']
    %6 = vsyncpa [#allocation3], 0
    %7 = vsyncpa [#allocation4], 0
    // Predicated region
    $region2: #{tpu_custom_call.1} parent=1 // pred_check
      _
    $region3: #{tpu_custom_call.1} parent=1 // pred_check_branch
      %9 = sbr.rel (0) target = $region5
    $region4: #{tpu_custom_call.1} parent=1 // pred_region
      %s11 = ssub.s32 16, 16
      %12 = vsyncadd [#allocation3], %s11
      %s14 = sshll.u32 [#allocation2], 4
      %s15 = int_to_ptr.vmem [resolvable:$true] %s14
      %17 = dma.hbm_to_vmem [thread:$0]  %s0, 16, %s15, [#allocation3]
    $region5: #{tpu_custom_call.1} parent=1 // pred_fallthru
      _
    // Predicated region
    $region6: #{tpu_custom_call.1} parent=1 // pred_check
      _
    $region7: #{tpu_custom_call.1} parent=1 // pred_check_branch
      %19 = sbr.rel (0) target = $region9
    $region8: #{tpu_custom_call.1} parent=1 // pred_region
      %20 = dma.done [#allocation3], 16
    $region9: #{tpu_custom_call.1} parent=1 // pred_fallthru
      _
    %v21 = vld [vmem:[#allocation2] sm:$0x1]
    %v22 = vmul.f32 %v21, 0.5
    %v23 = vtanh.pop %v22
    %v24 = vmul.f32 %v23, 0.5
    %v25 = vadd.f32 %v24, 0.5
    %vm26 = vcmask 253952
    %27 = vst.msk [vmem:[#allocation5] sm:$0x1] %vm26, %v25
    // Predicated region
    $region10: #{tpu_custom_call.1} parent=1 // pred_check
      _
    $region11: #{tpu_custom_call.1} parent=1 // pred_check_branch
      %29 = sbr.rel (0) target = $region13
    $region12: #{tpu_custom_call.1} parent=1 // pred_region
      %s31 = ssub.s32 16, 16
      %32 = vsyncadd [#allocation4], %s31
      %s34 = sshll.u32 [#allocation5], 4
      %s35 = int_to_ptr.vmem [resolvable:$true] %s34
      %37 = dma.vmem_to_hbm [thread:$0]  %s35, 16, %s1, [#allocation4]
    $region13: #{tpu_custom_call.1} parent=1 // pred_fallthru
      _
    // Predicated region
    $region14: #{tpu_custom_call.1} parent=1 // pred_check
      _
    $region15: #{tpu_custom_call.1} parent=1 // pred_check_branch
      %39 = sbr.rel (0) target = $region17
    $region16: #{tpu_custom_call.1} parent=1 // pred_region
      %40 = dma.done [#allocation4], 16
    $region17: #{tpu_custom_call.1} parent=1 // pred_fallthru
      _
    %41 = vsyncpa [#allocation3], 1
    %42 = vsyncpa [#allocation4], 1

</llo_original>
